<compile_context>
chip_gen: v6e
topology: v6e:2x2x1
jax: 0.10.0
libtpu: 0.0.40
codegen_flags: <defaults>
</compile_context>

<pallas_src>
import jax
import jax.numpy as jnp
from jax.experimental import pallas as pl
from jax.experimental.pallas import tpu as pltpu

_LANE = 128
_SUBLANE = 8

H1_RAW, H2_RAW, OUT_RAW = 500, 100, 2


def _round_up(x, m):
    return (x + m - 1) // m * m


def _mlp_kernel(x_ref, w1_ref, b1_ref, w2_ref, b2_ref, w3_ref, b3_ref, o_ref):
    # x tile: [TB, in_p] f32.  Weights resident bf16, biases f32.
    x = x_ref[...].astype(jnp.bfloat16)

    h1 = jnp.dot(x, w1_ref[...], preferred_element_type=jnp.float32)
    h1 = jnp.maximum(h1 + b1_ref[...], 0.0)

    h2 = jnp.dot(h1.astype(jnp.bfloat16), w2_ref[...],
                 preferred_element_type=jnp.float32)
    h2 = jnp.maximum(h2 + b2_ref[...], 0.0)

    out = jnp.dot(h2.astype(jnp.bfloat16), w3_ref[...],
                  preferred_element_type=jnp.float32)
    o_ref[...] = out + b3_ref[...]


def prepare_params(params):
    """Pad every Linear to lane-aligned widths and cast weights to bf16.

    Input params (torch layout, stored transposed):
      w1 [in,500]  b1 [500]   w2 [500,100]  b2 [100]   w3 [100,2]  b3 [2]
    """
    def pad2(a, rows, cols):
        return jnp.pad(a, ((0, rows - a.shape[0]), (0, cols - a.shape[1])))

    in_dim = params["w1"].shape[0]
    in_p = _round_up(in_dim, _LANE)
    h1_p = _round_up(H1_RAW, _LANE)    # 512
    h2_p = _round_up(H2_RAW, _LANE)    # 128
    out_p = _round_up(OUT_RAW, _LANE)  # 128 (lane-dense output slab)

    return {
        "w1": pad2(params["w1"], in_p, h1_p).astype(jnp.bfloat16),
        "w2": pad2(params["w2"], h1_p, h2_p).astype(jnp.bfloat16),
        "w3": pad2(params["w3"], h2_p, out_p).astype(jnp.bfloat16),
        "b1": pad2(params["b1"].reshape(1, -1), 1, h1_p).astype(jnp.float32),
        "b2": pad2(params["b2"].reshape(1, -1), 1, h2_p).astype(jnp.float32),
        "b3": pad2(params["b3"].reshape(1, -1), 1, out_p).astype(jnp.float32),
    }


def domain_classifier_dann_digits(x, kparams, *, block_batch=256):
    """Forward pass.  x: [batch, input_size] f32 -> [batch, 2] f32 logits."""
    w1, b1 = kparams["w1"], kparams["b1"]
    w2, b2 = kparams["w2"], kparams["b2"]
    w3, b3 = kparams["w3"], kparams["b3"]

    batch, in_dim = x.shape
    in_p = w1.shape[0]
    out_p = w3.shape[1]

    # Pad the feature dim to the lane-aligned weight width (zero columns).
    if in_p != in_dim:
        x = jnp.pad(x, ((0, 0), (0, in_p - in_dim)))

    # Batch tile: 256 rows feeds the 256-row MXU on v6e/v7x; for small batches
    # use a single sublane-aligned tile so we don't pad 8 rows up to 256.
    if batch >= block_batch:
        tb = block_batch
    else:
        tb = max(_SUBLANE, _round_up(batch, _SUBLANE))
    padded_batch = _round_up(batch, tb)
    if padded_batch != batch:
        x = jnp.pad(x, ((0, padded_batch - batch), (0, 0)))
    grid = (padded_batch // tb,)

    def resident(arr):
        # Whole-array block, constant index -> DMA'd once, stays in VMEM.
        return pl.BlockSpec(arr.shape, lambda i: (0, 0))

    flops = 2 * padded_batch * (in_p * w1.shape[1]
                                + w2.shape[0] * w2.shape[1]
                                + w3.shape[0] * w3.shape[1])
    bytes_accessed = (x.size * 4 + padded_batch * out_p * 4
                      + (w1.size + w2.size + w3.size) * 2
                      + (b1.size + b2.size + b3.size) * 4)

    out = pl.pallas_call(
        _mlp_kernel,
        out_shape=jax.ShapeDtypeStruct((padded_batch, out_p), jnp.float32),
        grid=grid,
        in_specs=[
            pl.BlockSpec((tb, in_p), lambda i: (i, 0)),   # x: tiled over batch
            resident(w1), resident(b1),
            resident(w2), resident(b2),
            resident(w3), resident(b3),
        ],
        out_specs=pl.BlockSpec((tb, out_p), lambda i: (i, 0)),
        compiler_params=pltpu.CompilerParams(
            dimension_semantics=("parallel",),
            vmem_limit_bytes=16 << 20,
        ),
        cost_estimate=pl.CostEstimate(
            flops=flops, transcendentals=0, bytes_accessed=bytes_accessed),
    )(x, w1, b1, w2, b2, w3, b3)

    return out[:batch, :OUT_RAW]


def init_params(key, input_size=128):
    """Deterministic synthetic init matching nn.Linear shapes (stored transposed)."""
    k1, k2, k3, k4, k5, k6 = jax.random.split(key, 6)

    def linear(kw, kb, fan_in, fan_out):
        bound = 1.0 / jnp.sqrt(fan_in)
        w = jax.random.uniform(kw, (fan_in, fan_out), jnp.float32, -bound, bound)
        b = jax.random.uniform(kb, (fan_out,), jnp.float32, -bound, bound)
        return w, b

    w1, b1 = linear(k1, k2, input_size, H1_RAW)
    w2, b2 = linear(k3, k4, H1_RAW, H2_RAW)
    w3, b3 = linear(k5, k6, H2_RAW, OUT_RAW)
    return {"w1": w1, "b1": b1, "w2": w2, "b2": b2, "w3": w3, "b3": b3}


def reference_forward(x, params):
    """Same math as the kernel: bf16 matmul operands, f32 accumulation."""
    def dot_bf16(a, w):
        return jnp.dot(a.astype(jnp.bfloat16), w.astype(jnp.bfloat16),
                       preferred_element_type=jnp.float32)

    h1 = jnp.maximum(dot_bf16(x, params["w1"]) + params["b1"][None, :], 0.0)
    h2 = jnp.maximum(dot_bf16(h1, params["w2"]) + params["b2"][None, :], 0.0)
    return dot_bf16(h2, params["w3"]) + params["b3"][None, :]


if __name__ == "__main__":
    key = jax.random.PRNGKey(0)
    k_params, k_x = jax.random.split(key)

    input_size = 128
    batch = 8
    raw_params = init_params(k_params, input_size=input_size)
    kparams = prepare_params(raw_params)
    x = jax.random.normal(k_x, (batch, input_size), jnp.float32)

    fwd = jax.jit(lambda xx: domain_classifier_dann_digits(xx, kparams))
    out = jax.block_until_ready(fwd(x))

    ref = reference_forward(x, raw_params)
    assert out.shape == (batch, OUT_RAW)
    assert jnp.allclose(out, ref, atol=1e-3, rtol=1e-3), "mismatch vs reference"

    print("KERNEL_OK")
</pallas_src>

<mosaic_0001>
module attributes {stable_mosaic.version = 11 : i64} {
  func.func @_mlp_kernel(%arg0: i32, %arg1: memref<8x128xf32, #tpu.memory_space<vmem>>, %arg2: memref<128x512xbf16, #tpu.memory_space<vmem>>, %arg3: memref<1x512xf32, #tpu.memory_space<vmem>>, %arg4: memref<512x128xbf16, #tpu.memory_space<vmem>>, %arg5: memref<1x128xf32, #tpu.memory_space<vmem>>, %arg6: memref<128x128xbf16, #tpu.memory_space<vmem>>, %arg7: memref<1x128xf32, #tpu.memory_space<vmem>>, %arg8: memref<8x128xf32, #tpu.memory_space<vmem>>) attributes {dimension_semantics = [#tpu.dimension_semantics<parallel>], iteration_bounds = array<i64: 1>, scalar_prefetch = 0 : i64, scratch_operands = 0 : i64, tpu.core_type = #tpu.core_type<tc>, window_params = [{transform_indices = @transform_0, window_bounds = array<i64: 8, 128>}, {pipeline_mode = #tpu.pipeline_mode<synchronous>, transform_indices = @transform_1, window_bounds = array<i64: 128, 512>}, {pipeline_mode = #tpu.pipeline_mode<synchronous>, transform_indices = @transform_2, window_bounds = array<i64: 1, 512>}, {pipeline_mode = #tpu.pipeline_mode<synchronous>, transform_indices = @transform_3, window_bounds = array<i64: 512, 128>}, {pipeline_mode = #tpu.pipeline_mode<synchronous>, transform_indices = @transform_4, window_bounds = array<i64: 1, 128>}, {pipeline_mode = #tpu.pipeline_mode<synchronous>, transform_indices = @transform_5, window_bounds = array<i64: 128, 128>}, {pipeline_mode = #tpu.pipeline_mode<synchronous>, transform_indices = @transform_6, window_bounds = array<i64: 1, 128>}, {transform_indices = @transform_7, window_bounds = array<i64: 8, 128>}]} {
    %c0 = arith.constant 0 : index
    %c0_0 = arith.constant 0 : index
    %0 = vector.load %arg1[%c0, %c0_0] : memref<8x128xf32, #tpu.memory_space<vmem>>, vector<8x128xf32>
    %1 = arith.truncf %0 : vector<8x128xf32> to vector<8x128xbf16>
    %c0_1 = arith.constant 0 : index
    %c0_2 = arith.constant 0 : index
    %2 = vector.load %arg2[%c0_1, %c0_2] : memref<128x512xbf16, #tpu.memory_space<vmem>>, vector<128x512xbf16>
    %cst = arith.constant dense<0.000000e+00> : vector<8x512xf32>
    %3 = tpu.matmul %1, %2, %cst {dimension_numbers = #tpu.dot_dimension_numbers<[1], [0], [0], [1], [0, 0, 1, 1], [], []>} : vector<8x128xbf16>, vector<128x512xbf16>, vector<8x512xf32> -> vector<8x512xf32>
    %c0_3 = arith.constant 0 : index
    %c0_4 = arith.constant 0 : index
    %4 = vector.load %arg3[%c0_3, %c0_4] : memref<1x512xf32, #tpu.memory_space<vmem>>, vector<1x512xf32>
    %5 = vector.broadcast %4 : vector<1x512xf32> to vector<8x512xf32>
    %6 = arith.addf %3, %5 : vector<8x512xf32>
    %cst_5 = arith.constant 0.000000e+00 : f32
    %7 = vector.broadcast %cst_5 : f32 to vector<8x512xf32>
    %8 = arith.maximumf %6, %7 : vector<8x512xf32>
    %9 = arith.truncf %8 : vector<8x512xf32> to vector<8x512xbf16>
    %c0_6 = arith.constant 0 : index
    %c0_7 = arith.constant 0 : index
    %10 = vector.load %arg4[%c0_6, %c0_7] : memref<512x128xbf16, #tpu.memory_space<vmem>>, vector<512x128xbf16>
    %cst_8 = arith.constant dense<0.000000e+00> : vector<8x128xf32>
    %11 = tpu.matmul %9, %10, %cst_8 {dimension_numbers = #tpu.dot_dimension_numbers<[1], [0], [0], [1], [0, 0, 1, 1], [], []>} : vector<8x512xbf16>, vector<512x128xbf16>, vector<8x128xf32> -> vector<8x128xf32>
    %c0_9 = arith.constant 0 : index
    %c0_10 = arith.constant 0 : index
    %12 = vector.load %arg5[%c0_9, %c0_10] : memref<1x128xf32, #tpu.memory_space<vmem>>, vector<1x128xf32>
    %13 = vector.broadcast %12 : vector<1x128xf32> to vector<8x128xf32>
    %14 = arith.addf %11, %13 : vector<8x128xf32>
    %cst_11 = arith.constant 0.000000e+00 : f32
    %15 = vector.broadcast %cst_11 : f32 to vector<8x128xf32>
    %16 = arith.maximumf %14, %15 : vector<8x128xf32>
    %17 = arith.truncf %16 : vector<8x128xf32> to vector<8x128xbf16>
    %c0_12 = arith.constant 0 : index
    %c0_13 = arith.constant 0 : index
    %18 = vector.load %arg6[%c0_12, %c0_13] : memref<128x128xbf16, #tpu.memory_space<vmem>>, vector<128x128xbf16>
    %cst_14 = arith.constant dense<0.000000e+00> : vector<8x128xf32>
    %19 = tpu.matmul %17, %18, %cst_14 {dimension_numbers = #tpu.dot_dimension_numbers<[1], [0], [0], [1], [0, 0, 1, 1], [], []>} : vector<8x128xbf16>, vector<128x128xbf16>, vector<8x128xf32> -> vector<8x128xf32>
    %c0_15 = arith.constant 0 : index
    %c0_16 = arith.constant 0 : index
    %20 = vector.load %arg7[%c0_15, %c0_16] : memref<1x128xf32, #tpu.memory_space<vmem>>, vector<1x128xf32>
    %21 = vector.broadcast %20 : vector<1x128xf32> to vector<8x128xf32>
    %22 = arith.addf %19, %21 : vector<8x128xf32>
    %c0_17 = arith.constant 0 : index
    %c0_18 = arith.constant 0 : index
    %23 = vector.load %arg8[%c0_17, %c0_18] : memref<8x128xf32, #tpu.memory_space<vmem>>, vector<8x128xf32>
    tpu.vector_store %arg8[%c0_17, %c0_18], %22 {strides = array<i32>} : memref<8x128xf32, #tpu.memory_space<vmem>>, vector<8x128xf32>,
    return
  }
  func.func @transform_0(%arg0: i32) -> (i32, i32) {
    %c0_i32 = arith.constant 0 : i32
    %c0_i32_0 = arith.constant 0 : i32
    return %arg0, %c0_i32 : i32, i32
  }
  func.func @transform_1(%arg0: i32) -> (i32, i32) {
    %c0_i32 = arith.constant 0 : i32
    %c0_i32_0 = arith.constant 0 : i32
    %c0_i32_1 = arith.constant 0 : i32
    return %c0_i32, %c0_i32_0 : i32, i32
  }
  func.func @transform_2(%arg0: i32) -> (i32, i32) {
    %c0_i32 = arith.constant 0 : i32
    %c0_i32_0 = arith.constant 0 : i32
    %c0_i32_1 = arith.constant 0 : i32
    return %c0_i32, %c0_i32_0 : i32, i32
  }
  func.func @transform_3(%arg0: i32) -> (i32, i32) {
    %c0_i32 = arith.constant 0 : i32
    %c0_i32_0 = arith.constant 0 : i32
    %c0_i32_1 = arith.constant 0 : i32
    return %c0_i32, %c0_i32_0 : i32, i32
  }
  func.func @transform_4(%arg0: i32) -> (i32, i32) {
    %c0_i32 = arith.constant 0 : i32
    %c0_i32_0 = arith.constant 0 : i32
    %c0_i32_1 = arith.constant 0 : i32
    return %c0_i32, %c0_i32_0 : i32, i32
  }
  func.func @transform_5(%arg0: i32) -> (i32, i32) {
    %c0_i32 = arith.constant 0 : i32
    %c0_i32_0 = arith.constant 0 : i32
    %c0_i32_1 = arith.constant 0 : i32
    return %c0_i32, %c0_i32_0 : i32, i32
  }
  func.func @transform_6(%arg0: i32) -> (i32, i32) {
    %c0_i32 = arith.constant 0 : i32
    %c0_i32_0 = arith.constant 0 : i32
    %c0_i32_1 = arith.constant 0 : i32
    return %c0_i32, %c0_i32_0 : i32, i32
  }
  func.func @transform_7(%arg0: i32) -> (i32, i32) {
    %c0_i32 = arith.constant 0 : i32
    %c0_i32_0 = arith.constant 0 : i32
    return %arg0, %c0_i32 : i32, i32
  }
}

</mosaic_0001>

<llo_original>
// kernel: _lambda_.1
$region0: #{_lambda_.1}
  #allocation0 [shape = 'u32[]', space=smem, size = 0x4, offset = 0x4, fixed_abs, tag = 'smem constant byte address 0x4 - core index']
  #allocation1 [shape = 'u32[144,128]{1,0:T(1,128)}', space=vmem, size = 0x12000, scoped, tag = 'internal scratch']
  %s0 = inlined_call_operand.hbm [shape: f32[8,128], index: 0, kind: input, shape index: {}]
  %s1 = inlined_call_operand.hbm [shape: bf16[128,512], index: 1, kind: input, shape index: {}]
  %s2 = inlined_call_operand.hbm [shape: f32[1,512], index: 2, kind: input, shape index: {}]
  %s3 = inlined_call_operand.hbm [shape: bf16[512,128], index: 3, kind: input, shape index: {}]
  %s4 = inlined_call_operand.vmem [shape: f32[1,128], index: 4, kind: input, shape index: {}]
  %s5 = inlined_call_operand.hbm [shape: bf16[128,128], index: 5, kind: input, shape index: {}]
  %s6 = inlined_call_operand.vmem [shape: f32[1,128], index: 6, kind: input, shape index: {}]
  %s7 = inlined_call_operand.vmem [shape: f32[8,128], index: 7, kind: output, shape index: {}]
  %s8 = sld [smem:[#allocation0]]
  $region58: #{_lambda_.1} parent=0
    _
  %s10 = ssub.s32 1, %s8
  %s11 = scalar_select 0, %s10, %s8
  $region1: #{_lambda_.1} parent=0
    #allocation2 [shape = 'u8[4096]{0}', space=vmem, size = 0x1000, scoped, tag = 'input window, operand 0, single buffered']
    #allocation3 [shape = 's32[1]{0}', space=sflag, size = 0x4, scoped, tag = 'scoped memory for _lambda_.1']
    #allocation4 [shape = 'u8[131072]{0}', space=vmem, size = 0x20000, scoped, tag = 'input window, operand 1, single buffered']
    #allocation5 [shape = 's32[1]{0}', space=sflag, size = 0x4, scoped, tag = 'scoped memory for _lambda_.1']
    #allocation6 [shape = 'u8[2048]{0}', space=vmem, size = 0x800, scoped, tag = 'input window, operand 2, single buffered']
    #allocation7 [shape = 'u8[131072]{0}', space=vmem, size = 0x20000, scoped, tag = 'input window, operand 3, single buffered']
    #allocation8 [shape = 's32[1]{0}', space=sflag, size = 0x4, scoped, tag = 'scoped memory for _lambda_.1']
    #allocation9 [shape = 'u8[32768]{0}', space=vmem, size = 0x8000, scoped, tag = 'input window, operand 5, single buffered']
    %12 = vsyncpa [#allocation3], 0
    %13 = vsyncpa [#allocation5], 0
    %14 = vsyncpa [#allocation8], 0
    // Predicated region
    $region2: #{_lambda_.1} parent=1 // pred_check
      _
    $region3: #{_lambda_.1} parent=1 // pred_check_branch
      %16 = sbr.rel (0) target = $region5
    $region4: #{_lambda_.1} parent=1 // pred_region
      %s18 = ssub.s32 128, 128
      %19 = vsyncadd [#allocation3], %s18
      %s21 = sshll.u32 [#allocation2], 4
      %s22 = int_to_ptr.vmem [resolvable:$true] %s21
      %24 = dma.hbm_to_vmem [thread:$0]  %s0, 128, %s22, [#allocation3]
    $region5: #{_lambda_.1} parent=1 // pred_fallthru
      _
    // Predicated region
    $region6: #{_lambda_.1} parent=1 // pred_check
      _
    $region7: #{_lambda_.1} parent=1 // pred_check_branch
      %26 = sbr.rel (0) target = $region9
    $region8: #{_lambda_.1} parent=1 // pred_region
      %s28 = ssub.s32 4096, 4096
      %29 = vsyncadd [#allocation5], %s28
      %s30 = sshll.u32 [#allocation4], 4
      %s31 = int_to_ptr.vmem [resolvable:$true] %s30
      %36 = dma.hbm_to_vmem [thread:$0]  %s1, 4096, %s31, [#allocation5], 256, 256, 16
    $region9: #{_lambda_.1} parent=1 // pred_fallthru
      _
    // Predicated region
    $region10: #{_lambda_.1} parent=1 // pred_check
      _
    $region11: #{_lambda_.1} parent=1 // pred_check_branch
      %38 = sbr.rel (0) target = $region13
    $region12: #{_lambda_.1} parent=1 // pred_region
      %s40 = ssub.s32 64, 64
      %41 = vsyncadd [#allocation5], %s40
      %s43 = sshll.u32 [#allocation6], 4
      %s44 = int_to_ptr.vmem [resolvable:$true] %s43
      %46 = dma.hbm_to_vmem [thread:$0]  %s2, 64, %s44, [#allocation5]
    $region13: #{_lambda_.1} parent=1 // pred_fallthru
      _
    // Predicated region
    $region14: #{_lambda_.1} parent=1 // pred_check
      _
    $region15: #{_lambda_.1} parent=1 // pred_check_branch
      %48 = sbr.rel (0) target = $region17
    $region16: #{_lambda_.1} parent=1 // pred_region
      %s50 = ssub.s32 4096, 4096
      %51 = vsyncadd [#allocation8], %s50
      %s52 = sshll.u32 [#allocation7], 4
      %s53 = int_to_ptr.vmem [resolvable:$true] %s52
      %58 = dma.hbm_to_vmem [thread:$0]  %s3, 4096, %s53, [#allocation8], 64, 64, 4
    $region17: #{_lambda_.1} parent=1 // pred_fallthru
      _
    // Predicated region
    $region18: #{_lambda_.1} parent=1 // pred_check
      _
    $region19: #{_lambda_.1} parent=1 // pred_check_branch
      %60 = sbr.rel (0) target = $region21
    $region20: #{_lambda_.1} parent=1 // pred_region
      _
    $region21: #{_lambda_.1} parent=1 // pred_fallthru
      _
    // Predicated region
    $region22: #{_lambda_.1} parent=1 // pred_check
      _
    $region23: #{_lambda_.1} parent=1 // pred_check_branch
      %62 = sbr.rel (0) target = $region25
    $region24: #{_lambda_.1} parent=1 // pred_region
      %s64 = ssub.s32 1024, 1024
      %65 = vsyncadd [#allocation8], %s64
      %s66 = sshll.u32 [#allocation9], 4
      %s67 = int_to_ptr.vmem [resolvable:$true] %s66
      %72 = dma.hbm_to_vmem [thread:$0]  %s5, 1024, %s67, [#allocation8], 64, 64, 4
    $region25: #{_lambda_.1} parent=1 // pred_fallthru
      _
    // Predicated region
    $region26: #{_lambda_.1} parent=1 // pred_check
      _
    $region27: #{_lambda_.1} parent=1 // pred_check_branch
      %74 = sbr.rel (0) target = $region29
    $region28: #{_lambda_.1} parent=1 // pred_region
      _
    $region29: #{_lambda_.1} parent=1 // pred_fallthru
      _
    // Predicated region
    $region30: #{_lambda_.1} parent=1 // pred_check
      _
    $region31: #{_lambda_.1} parent=1 // pred_check_branch
      %76 = sbr.rel (0) target = $region33
    $region32: #{_lambda_.1} parent=1 // pred_region
      %77 = dma.done [#allocation3], 128
    $region33: #{_lambda_.1} parent=1 // pred_fallthru
      _
    // Predicated region
    $region34: #{_lambda_.1} parent=1 // pred_check
      _
    $region35: #{_lambda_.1} parent=1 // pred_check_branch
      %79 = sbr.rel (0) target = $region37
    $region36: #{_lambda_.1} parent=1 // pred_region
      %80 = dma.done [#allocation5], 4096
    $region37: #{_lambda_.1} parent=1 // pred_fallthru
      _
    // Predicated region
    $region38: #{_lambda_.1} parent=1 // pred_check
      _
    $region39: #{_lambda_.1} parent=1 // pred_check_branch
      %82 = sbr.rel (0) target = $region41
    $region40: #{_lambda_.1} parent=1 // pred_region
      %83 = dma.done [#allocation5], 64
    $region41: #{_lambda_.1} parent=1 // pred_fallthru
      _
    // Predicated region
    $region42: #{_lambda_.1} parent=1 // pred_check
      _
    $region43: #{_lambda_.1} parent=1 // pred_check_branch
      %85 = sbr.rel (0) target = $region45
    $region44: #{_lambda_.1} parent=1 // pred_region
      %86 = dma.done [#allocation8], 4096
    $region45: #{_lambda_.1} parent=1 // pred_fallthru
      _
    // Predicated region
    $region46: #{_lambda_.1} parent=1 // pred_check
      _
    $region47: #{_lambda_.1} parent=1 // pred_check_branch
      %88 = sbr.rel (0) target = $region49
    $region48: #{_lambda_.1} parent=1 // pred_region
      %89 = dma.done [#allocation8], 1024
    $region49: #{_lambda_.1} parent=1 // pred_fallthru
      _
    %v91 = vld [vmem:[#allocation2] sm:$0xff]
    %v92 = vpack.c.bf16 %v91, %v91
    %v93 = vld [vmem:[#allocation4] sm:$0xff]
    %v94 = vld [vmem:[#allocation4 + $0x8] sm:$0xff]
    %v95 = vld [vmem:[#allocation4 + $0x10] sm:$0xff]
    %v96 = vld [vmem:[#allocation4 + $0x18] sm:$0xff]
    %v97 = vld [vmem:[#allocation4 + $0x20] sm:$0xff]
    %v98 = vld [vmem:[#allocation4 + $0x28] sm:$0xff]
    %v99 = vld [vmem:[#allocation4 + $0x30] sm:$0xff]
    %v100 = vld [vmem:[#allocation4 + $0x38] sm:$0xff]
    %v101 = vld [vmem:[#allocation4 + $0x40] sm:$0xff]
    %v102 = vld [vmem:[#allocation4 + $0x48] sm:$0xff]
    %v103 = vld [vmem:[#allocation4 + $0x50] sm:$0xff]
    %v104 = vld [vmem:[#allocation4 + $0x58] sm:$0xff]
    %v105 = vld [vmem:[#allocation4 + $0x60] sm:$0xff]
    %v106 = vld [vmem:[#allocation4 + $0x68] sm:$0xff]
    %v107 = vld [vmem:[#allocation4 + $0x70] sm:$0xff]
    %v108 = vld [vmem:[#allocation4 + $0x78] sm:$0xff]
    %v109 = vld [vmem:[#allocation4 + $0x80] sm:$0xff]
    %v110 = vld [vmem:[#allocation4 + $0x88] sm:$0xff]
    %v111 = vld [vmem:[#allocation4 + $0x90] sm:$0xff]
    %v112 = vld [vmem:[#allocation4 + $0x98] sm:$0xff]
    %v113 = vld [vmem:[#allocation4 + $0xa0] sm:$0xff]
    %v114 = vld [vmem:[#allocation4 + $0xa8] sm:$0xff]
    %v115 = vld [vmem:[#allocation4 + $0xb0] sm:$0xff]
    %v116 = vld [vmem:[#allocation4 + $0xb8] sm:$0xff]
    %v117 = vld [vmem:[#allocation4 + $0xc0] sm:$0xff]
    %v118 = vld [vmem:[#allocation4 + $0xc8] sm:$0xff]
    %v119 = vld [vmem:[#allocation4 + $0xd0] sm:$0xff]
    %v120 = vld [vmem:[#allocation4 + $0xd8] sm:$0xff]
    %v121 = vld [vmem:[#allocation4 + $0xe0] sm:$0xff]
    %v122 = vld [vmem:[#allocation4 + $0xe8] sm:$0xff]
    %v123 = vld [vmem:[#allocation4 + $0xf0] sm:$0xff]
    %v124 = vld [vmem:[#allocation4 + $0xf8] sm:$0xff]
    %v125 = vld [vmem:[#allocation6] sm:$0xf]
    %v127 = vlaneseq
    %v128 = vshrl.u32 %v127, 7
    %v129 = vsub.s32 0, %v128
    %v130 = vrot.slane %v125, %v129
    %v131 = vlaneseq
    %v132 = vshrl.u32 %v131, 7
    %v133 = vsub.s32 1, %v132
    %v134 = vrot.slane %v125, %v133
    %v135 = vlaneseq
    %v136 = vshrl.u32 %v135, 7
    %v137 = vsub.s32 2, %v136
    %v138 = vrot.slane %v125, %v137
    %v139 = vlaneseq
    %v140 = vshrl.u32 %v139, 7
    %v141 = vsub.s32 3, %v140
    %v142 = vrot.slane %v125, %v141
    %v179 = vunpack.c.l.b16 %v93
    %v180 = vunpack.c.h.b16 %v93
    %v181 = vunpack.c.l.b16 %v94
    %v182 = vunpack.c.h.b16 %v94
    %v183 = vunpack.c.l.b16 %v95
    %v184 = vunpack.c.h.b16 %v95
    %v185 = vunpack.c.l.b16 %v96
    %v186 = vunpack.c.h.b16 %v96
    %v187 = vunpack.c.l.b16 %v97
    %v188 = vunpack.c.h.b16 %v97
    %v189 = vunpack.c.l.b16 %v98
    %v190 = vunpack.c.h.b16 %v98
    %v191 = vunpack.c.l.b16 %v99
    %v192 = vunpack.c.h.b16 %v99
    %v193 = vunpack.c.l.b16 %v100
    %v194 = vunpack.c.h.b16 %v100
    %v195 = vunpack.c.l.b16 %v101
    %v196 = vunpack.c.h.b16 %v101
    %v197 = vunpack.c.l.b16 %v102
    %v198 = vunpack.c.h.b16 %v102
    %v199 = vunpack.c.l.b16 %v103
    %v200 = vunpack.c.h.b16 %v103
    %v201 = vunpack.c.l.b16 %v104
    %v202 = vunpack.c.h.b16 %v104
    %v203 = vunpack.c.l.b16 %v105
    %v204 = vunpack.c.h.b16 %v105
    %v205 = vunpack.c.l.b16 %v106
    %v206 = vunpack.c.h.b16 %v106
    %v207 = vunpack.c.l.b16 %v107
    %v208 = vunpack.c.h.b16 %v107
    %v209 = vunpack.c.l.b16 %v108
    %v210 = vunpack.c.h.b16 %v108
    %v211 = vunpack.c.l.b16 %v109
    %v212 = vunpack.c.h.b16 %v109
    %v213 = vunpack.c.l.b16 %v110
    %v214 = vunpack.c.h.b16 %v110
    %v215 = vunpack.c.l.b16 %v111
    %v216 = vunpack.c.h.b16 %v111
    %v217 = vunpack.c.l.b16 %v112
    %v218 = vunpack.c.h.b16 %v112
    %v219 = vunpack.c.l.b16 %v113
    %v220 = vunpack.c.h.b16 %v113
    %v221 = vunpack.c.l.b16 %v114
    %v222 = vunpack.c.h.b16 %v114
    %v223 = vunpack.c.l.b16 %v115
    %v224 = vunpack.c.h.b16 %v115
    %v225 = vunpack.c.l.b16 %v116
    %v226 = vunpack.c.h.b16 %v116
    %v227 = vunpack.c.l.b16 %v117
    %v228 = vunpack.c.h.b16 %v117
    %v229 = vunpack.c.l.b16 %v118
    %v230 = vunpack.c.h.b16 %v118
    %v231 = vunpack.c.l.b16 %v119
    %v232 = vunpack.c.h.b16 %v119
    %v233 = vunpack.c.l.b16 %v120
    %v234 = vunpack.c.h.b16 %v120
    %v235 = vunpack.c.l.b16 %v121
    %v236 = vunpack.c.h.b16 %v121
    %v237 = vunpack.c.l.b16 %v122
    %v238 = vunpack.c.h.b16 %v122
    %v239 = vunpack.c.l.b16 %v123
    %v240 = vunpack.c.h.b16 %v123
    %v241 = vunpack.c.l.b16 %v124
    %v242 = vunpack.c.h.b16 %v124
    %v243 = vpack.c.b16 %v183, %v179
    %v244 = vpack.c.b16 %v184, %v180
    %v245 = vpack.c.b16 %v185, %v181
    %v246 = vpack.c.b16 %v186, %v182
    %v247 = vpack.c.b16 %v191, %v187
    %v248 = vpack.c.b16 %v192, %v188
    %v249 = vpack.c.b16 %v193, %v189
    %v250 = vpack.c.b16 %v194, %v190
    %v251 = vpack.c.b16 %v199, %v195
    %v252 = vpack.c.b16 %v200, %v196
    %v253 = vpack.c.b16 %v201, %v197
    %v254 = vpack.c.b16 %v202, %v198
    %v255 = vpack.c.b16 %v207, %v203
    %v256 = vpack.c.b16 %v208, %v204
    %v257 = vpack.c.b16 %v209, %v205
    %v258 = vpack.c.b16 %v210, %v206
    %v259 = vpack.c.b16 %v215, %v211
    %v260 = vpack.c.b16 %v216, %v212
    %v261 = vpack.c.b16 %v217, %v213
    %v262 = vpack.c.b16 %v218, %v214
    %v263 = vpack.c.b16 %v223, %v219
    %v264 = vpack.c.b16 %v224, %v220
    %v265 = vpack.c.b16 %v225, %v221
    %v266 = vpack.c.b16 %v226, %v222
    %v267 = vpack.c.b16 %v231, %v227
    %v268 = vpack.c.b16 %v232, %v228
    %v269 = vpack.c.b16 %v233, %v229
    %v270 = vpack.c.b16 %v234, %v230
    %v271 = vpack.c.b16 %v239, %v235
    %v272 = vpack.c.b16 %v240, %v236
    %v273 = vpack.c.b16 %v241, %v237
    %v274 = vpack.c.b16 %v242, %v238
    %307 = vmatprep.subr.bf16.mxu0 %v272
    %308 = vmatpush1.bf16.msra.mxu0 %v271
    %309 = vmatprep.subr.bf16.mxu0 %v268
    %310 = vmatpush1.bf16.msra.mxu0 %v267
    %311 = vmatprep.subr.bf16.mxu0 %v264
    %312 = vmatpush1.bf16.msra.mxu0 %v263
    %313 = vmatprep.subr.bf16.mxu0 %v260
    %314 = vmatpush1.bf16.msra.mxu0 %v259
    %315 = vmatprep.subr.bf16.mxu0 %v256
    %316 = vmatpush1.bf16.msra.mxu0 %v255
    %317 = vmatprep.subr.bf16.mxu0 %v252
    %318 = vmatpush1.bf16.msra.mxu0 %v251
    %319 = vmatprep.subr.bf16.mxu0 %v248
    %320 = vmatpush1.bf16.msra.mxu0 %v247
    %321 = vmatprep.subr.bf16.mxu0 %v244
    %322 = vmatpush1.bf16.msra.mxu0 %v243
    %323 = vmatprep.subr.bf16.mxu0 0
    %324 = vmatpush2.bf16.msra.mxu0 0
    %325 = vmatprep.subr.bf16.mxu0 0
    %326 = vmatpush2.bf16.msra.mxu0 0
    %327 = vmatprep.subr.bf16.mxu0 0
    %328 = vmatpush2.bf16.msra.mxu0 0
    %329 = vmatprep.subr.bf16.mxu0 0
    %330 = vmatpush2.bf16.msra.mxu0 0
    %331 = vmatprep.subr.bf16.mxu0 0
    %332 = vmatpush2.bf16.msra.mxu0 0
    %333 = vmatprep.subr.bf16.mxu0 0
    %334 = vmatpush2.bf16.msra.mxu0 0
    %335 = vmatprep.subr.bf16.mxu0 0
    %336 = vmatpush2.bf16.msra.mxu0 0
    %337 = vmatprep.subr.bf16.mxu0 0
    %338 = vmatpush2.bf16.msra.mxu0 0
    %339 = vmatprep.mubr.bf16.mxu0 0
    %340 = vmatmul.mubr.bf16.gmra.mxu0 %v92
    %v341 = vpop.f32.mrf.mxu0
    %v342 = vadd.f32 %v130, %v341
    %v343 = vpop.f32.mrf.mxu0
    %v344 = vadd.f32 %v134, %v343
    %v345 = vpop.f32.mrf.mxu0
    %v346 = vpop.f32.mrf.mxu0
    %347 = vdwg.mxu0
    %348 = vmatprep.subr.bf16.mxu0 %v274
    %349 = vmatpush1.bf16.msra.mxu0 %v273
    %350 = vmatprep.subr.bf16.mxu0 %v270
    %351 = vmatpush1.bf16.msra.mxu0 %v269
    %352 = vmatprep.subr.bf16.mxu0 %v266
    %353 = vmatpush1.bf16.msra.mxu0 %v265
    %354 = vmatprep.subr.bf16.mxu0 %v262
    %355 = vmatpush1.bf16.msra.mxu0 %v261
    %356 = vmatprep.subr.bf16.mxu0 %v258
    %357 = vmatpush1.bf16.msra.mxu0 %v257
    %358 = vmatprep.subr.bf16.mxu0 %v254
    %359 = vmatpush1.bf16.msra.mxu0 %v253
    %360 = vmatprep.subr.bf16.mxu0 %v250
    %361 = vmatpush1.bf16.msra.mxu0 %v249
    %362 = vmatprep.subr.bf16.mxu0 %v246
    %363 = vmatpush1.bf16.msra.mxu0 %v245
    %364 = vmatprep.subr.bf16.mxu0 0
    %365 = vmatpush2.bf16.msra.mxu0 0
    %366 = vmatprep.subr.bf16.mxu0 0
    %367 = vmatpush2.bf16.msra.mxu0 0
    %368 = vmatprep.subr.bf16.mxu0 0
    %369 = vmatpush2.bf16.msra.mxu0 0
    %370 = vmatprep.subr.bf16.mxu0 0
    %371 = vmatpush2.bf16.msra.mxu0 0
    %372 = vmatprep.subr.bf16.mxu0 0
    %373 = vmatpush2.bf16.msra.mxu0 0
    %374 = vmatprep.subr.bf16.mxu0 0
    %375 = vmatpush2.bf16.msra.mxu0 0
    %376 = vmatprep.subr.bf16.mxu0 0
    %377 = vmatpush2.bf16.msra.mxu0 0
    %378 = vmatprep.subr.bf16.mxu0 0
    %379 = vmatpush2.bf16.msra.mxu0 0
    %380 = vmatprep.mubr.bf16.mxu0 0
    %381 = vmatmul.mubr.bf16.gmra.mxu0 %v92
    %v382 = vpop.f32.mrf.mxu0
    %v383 = vadd.f32 %v138, %v382
    %v384 = vpop.f32.mrf.mxu0
    %v385 = vadd.f32 %v142, %v384
    %v386 = vpop.f32.mrf.mxu0
    %v387 = vpop.f32.mrf.mxu0
    %388 = vdwg.mxu0
    %v389 = vmax.f32 %v342, 0.0
    %v390 = vmax.f32 %v344, 0.0
    %v391 = vmax.f32 %v383, 0.0
    %v392 = vmax.f32 %v385, 0.0
    %v393 = vpack.c.bf16 %v389, %v389
    %v394 = vpack.c.bf16 %v390, %v390
    %v395 = vpack.c.bf16 %v391, %v391
    %v396 = vpack.c.bf16 %v392, %v392
    %v397 = vld [vmem:[#allocation7] sm:$0xf]
    %v398 = vld [vmem:[#allocation7 + $0x4] sm:$0xf]
    %v399 = vld [vmem:[#allocation7 + $0x8] sm:$0xf]
    %v400 = vld [vmem:[#allocation7 + $0xc] sm:$0xf]
    %v401 = vld [vmem:[#allocation7 + $0x10] sm:$0xf]
    %v402 = vld [vmem:[#allocation7 + $0x14] sm:$0xf]
    %v403 = vld [vmem:[#allocation7 + $0x18] sm:$0xf]
    %v404 = vld [vmem:[#allocation7 + $0x1c] sm:$0xf]
    %v405 = vld [vmem:[#allocation7 + $0x20] sm:$0xf]
    %v406 = vld [vmem:[#allocation7 + $0x24] sm:$0xf]
    %v407 = vld [vmem:[#allocation7 + $0x28] sm:$0xf]
    %v408 = vld [vmem:[#allocation7 + $0x2c] sm:$0xf]
    %v409 = vld [vmem:[#allocation7 + $0x30] sm:$0xf]
    %v410 = vld [vmem:[#allocation7 + $0x34] sm:$0xf]
    %v411 = vld [vmem:[#allocation7 + $0x38] sm:$0xf]
    %v412 = vld [vmem:[#allocation7 + $0x3c] sm:$0xf]
    %v413 = vld [vmem:[#allocation7 + $0x40] sm:$0xf]
    %v414 = vld [vmem:[#allocation7 + $0x44] sm:$0xf]
    %v415 = vld [vmem:[#allocation7 + $0x48] sm:$0xf]
    %v416 = vld [vmem:[#allocation7 + $0x4c] sm:$0xf]
    %v417 = vld [vmem:[#allocation7 + $0x50] sm:$0xf]
    %v418 = vld [vmem:[#allocation7 + $0x54] sm:$0xf]
    %v419 = vld [vmem:[#allocation7 + $0x58] sm:$0xf]
    %v420 = vld [vmem:[#allocation7 + $0x5c] sm:$0xf]
    %v421 = vld [vmem:[#allocation7 + $0x60] sm:$0xf]
    %v422 = vld [vmem:[#allocation7 + $0x64] sm:$0xf]
    %v423 = vld [vmem:[#allocation7 + $0x68] sm:$0xf]
    %v424 = vld [vmem:[#allocation7 + $0x6c] sm:$0xf]
    %v425 = vld [vmem:[#allocation7 + $0x70] sm:$0xf]
    %v426 = vld [vmem:[#allocation7 + $0x74] sm:$0xf]
    %v427 = vld [vmem:[#allocation7 + $0x78] sm:$0xf]
    %v428 = vld [vmem:[#allocation7 + $0x7c] sm:$0xf]
    %v429 = vld [vmem:[#allocation7 + $0x80] sm:$0xf]
    %v430 = vld [vmem:[#allocation7 + $0x84] sm:$0xf]
    %v431 = vld [vmem:[#allocation7 + $0x88] sm:$0xf]
    %v432 = vld [vmem:[#allocation7 + $0x8c] sm:$0xf]
    %v433 = vld [vmem:[#allocation7 + $0x90] sm:$0xf]
    %v434 = vld [vmem:[#allocation7 + $0x94] sm:$0xf]
    %v435 = vld [vmem:[#allocation7 + $0x98] sm:$0xf]
    %v436 = vld [vmem:[#allocation7 + $0x9c] sm:$0xf]
    %v437 = vld [vmem:[#allocation7 + $0xa0] sm:$0xf]
    %v438 = vld [vmem:[#allocation7 + $0xa4] sm:$0xf]
    %v439 = vld [vmem:[#allocation7 + $0xa8] sm:$0xf]
    %v440 = vld [vmem:[#allocation7 + $0xac] sm:$0xf]
    %v441 = vld [vmem:[#allocation7 + $0xb0] sm:$0xf]
    %v442 = vld [vmem:[#allocation7 + $0xb4] sm:$0xf]
    %v443 = vld [vmem:[#allocation7 + $0xb8] sm:$0xf]
    %v444 = vld [vmem:[#allocation7 + $0xbc] sm:$0xf]
    %v445 = vld [vmem:[#allocation7 + $0xc0] sm:$0xf]
    %v446 = vld [vmem:[#allocation7 + $0xc4] sm:$0xf]
    %v447 = vld [vmem:[#allocation7 + $0xc8] sm:$0xf]
    %v448 = vld [vmem:[#allocation7 + $0xcc] sm:$0xf]
    %v449 = vld [vmem:[#allocation7 + $0xd0] sm:$0xf]
    %v450 = vld [vmem:[#allocation7 + $0xd4] sm:$0xf]
    %v451 = vld [vmem:[#allocation7 + $0xd8] sm:$0xf]
    %v452 = vld [vmem:[#allocation7 + $0xdc] sm:$0xf]
    %v453 = vld [vmem:[#allocation7 + $0xe0] sm:$0xf]
    %v454 = vld [vmem:[#allocation7 + $0xe4] sm:$0xf]
    %v455 = vld [vmem:[#allocation7 + $0xe8] sm:$0xf]
    %v456 = vld [vmem:[#allocation7 + $0xec] sm:$0xf]
    %v457 = vld [vmem:[#allocation7 + $0xf0] sm:$0xf]
    %v458 = vld [vmem:[#allocation7 + $0xf4] sm:$0xf]
    %v459 = vld [vmem:[#allocation7 + $0xf8] sm:$0xf]
    %v460 = vld [vmem:[#allocation7 + $0xfc] sm:$0xf]
    %v461 = vld [vmem:[%s4] sm:$0x1]
    %v463 = vlaneseq
    %v464 = vshrl.u32 %v463, 7
    %v465 = vsub.s32 0, %v464
    %v466 = vrot.slane %v461, %v465
    %v532 = vunpack.c.l.b16 %v397
    %v533 = vunpack.c.l.b16 %v398
    %v534 = vunpack.c.l.b16 %v399
    %v535 = vunpack.c.l.b16 %v400
    %v536 = vunpack.c.l.b16 %v401
    %v537 = vunpack.c.l.b16 %v402
    %v538 = vunpack.c.l.b16 %v403
    %v539 = vunpack.c.l.b16 %v404
    %v540 = vunpack.c.l.b16 %v405
    %v541 = vunpack.c.l.b16 %v406
    %v542 = vunpack.c.l.b16 %v407
    %v543 = vunpack.c.l.b16 %v408
    %v544 = vunpack.c.l.b16 %v409
    %v545 = vunpack.c.l.b16 %v410
    %v546 = vunpack.c.l.b16 %v411
    %v547 = vunpack.c.l.b16 %v412
    %v548 = vunpack.c.l.b16 %v413
    %v549 = vunpack.c.l.b16 %v414
    %v550 = vunpack.c.l.b16 %v415
    %v551 = vunpack.c.l.b16 %v416
    %v552 = vunpack.c.l.b16 %v417
    %v553 = vunpack.c.l.b16 %v418
    %v554 = vunpack.c.l.b16 %v419
    %v555 = vunpack.c.l.b16 %v420
    %v556 = vunpack.c.l.b16 %v421
    %v557 = vunpack.c.l.b16 %v422
    %v558 = vunpack.c.l.b16 %v423
    %v559 = vunpack.c.l.b16 %v424
    %v560 = vunpack.c.l.b16 %v425
    %v561 = vunpack.c.l.b16 %v426
    %v562 = vunpack.c.l.b16 %v427
    %v563 = vunpack.c.l.b16 %v428
    %v564 = vunpack.c.l.b16 %v429
    %v565 = vunpack.c.l.b16 %v430
    %v566 = vunpack.c.l.b16 %v431
    %v567 = vunpack.c.l.b16 %v432
    %v568 = vunpack.c.l.b16 %v433
    %v569 = vunpack.c.l.b16 %v434
    %v570 = vunpack.c.l.b16 %v435
    %v571 = vunpack.c.l.b16 %v436
    %v572 = vunpack.c.l.b16 %v437
    %v573 = vunpack.c.l.b16 %v438
    %v574 = vunpack.c.l.b16 %v439
    %v575 = vunpack.c.l.b16 %v440
    %v576 = vunpack.c.l.b16 %v441
    %v577 = vunpack.c.l.b16 %v442
    %v578 = vunpack.c.l.b16 %v443
    %v579 = vunpack.c.l.b16 %v444
    %v580 = vunpack.c.l.b16 %v445
    %v581 = vunpack.c.l.b16 %v446
    %v582 = vunpack.c.l.b16 %v447
    %v583 = vunpack.c.l.b16 %v448
    %v584 = vunpack.c.l.b16 %v449
    %v585 = vunpack.c.l.b16 %v450
    %v586 = vunpack.c.l.b16 %v451
    %v587 = vunpack.c.l.b16 %v452
    %v588 = vunpack.c.l.b16 %v453
    %v589 = vunpack.c.l.b16 %v454
    %v590 = vunpack.c.l.b16 %v455
    %v591 = vunpack.c.l.b16 %v456
    %v592 = vunpack.c.l.b16 %v457
    %v593 = vunpack.c.l.b16 %v458
    %v594 = vunpack.c.l.b16 %v459
    %v595 = vunpack.c.l.b16 %v460
    %v596 = vpack.c.b16 %v533, %v532
    %v597 = vpack.c.b16 %v535, %v534
    %v598 = vpack.c.b16 %v537, %v536
    %v599 = vpack.c.b16 %v539, %v538
    %v600 = vpack.c.b16 %v541, %v540
    %v601 = vpack.c.b16 %v543, %v542
    %v602 = vpack.c.b16 %v545, %v544
    %v603 = vpack.c.b16 %v547, %v546
    %v604 = vpack.c.b16 %v549, %v548
    %v605 = vpack.c.b16 %v551, %v550
    %v606 = vpack.c.b16 %v553, %v552
    %v607 = vpack.c.b16 %v555, %v554
    %v608 = vpack.c.b16 %v557, %v556
    %v609 = vpack.c.b16 %v559, %v558
    %v610 = vpack.c.b16 %v561, %v560
    %v611 = vpack.c.b16 %v563, %v562
    %v612 = vpack.c.b16 %v565, %v564
    %v613 = vpack.c.b16 %v567, %v566
    %v614 = vpack.c.b16 %v569, %v568
    %v615 = vpack.c.b16 %v571, %v570
    %v616 = vpack.c.b16 %v573, %v572
    %v617 = vpack.c.b16 %v575, %v574
    %v618 = vpack.c.b16 %v577, %v576
    %v619 = vpack.c.b16 %v579, %v578
    %v620 = vpack.c.b16 %v581, %v580
    %v621 = vpack.c.b16 %v583, %v582
    %v622 = vpack.c.b16 %v585, %v584
    %v623 = vpack.c.b16 %v587, %v586
    %v624 = vpack.c.b16 %v589, %v588
    %v625 = vpack.c.b16 %v591, %v590
    %v626 = vpack.c.b16 %v593, %v592
    %v627 = vpack.c.b16 %v595, %v594
    %660 = vmatprep.subr.bf16.mxu0 0
    %661 = vmatpush1.bf16.msra.mxu0 %v603
    %662 = vmatprep.subr.bf16.mxu0 0
    %663 = vmatpush1.bf16.msra.mxu0 %v602
    %664 = vmatprep.subr.bf16.mxu0 0
    %665 = vmatpush1.bf16.msra.mxu0 %v601
    %666 = vmatprep.subr.bf16.mxu0 0
    %667 = vmatpush1.bf16.msra.mxu0 %v600
    %668 = vmatprep.subr.bf16.mxu0 0
    %669 = vmatpush1.bf16.msra.mxu0 %v599
    %670 = vmatprep.subr.bf16.mxu0 0
    %671 = vmatpush1.bf16.msra.mxu0 %v598
    %672 = vmatprep.subr.bf16.mxu0 0
    %673 = vmatpush1.bf16.msra.mxu0 %v597
    %674 = vmatprep.subr.bf16.mxu0 0
    %675 = vmatpush1.bf16.msra.mxu0 %v596
    %676 = vmatprep.subr.bf16.mxu0 0
    %677 = vmatpush2.bf16.msra.mxu0 %v611
    %678 = vmatprep.subr.bf16.mxu0 0
    %679 = vmatpush2.bf16.msra.mxu0 %v610
    %680 = vmatprep.subr.bf16.mxu0 0
    %681 = vmatpush2.bf16.msra.mxu0 %v609
    %682 = vmatprep.subr.bf16.mxu0 0
    %683 = vmatpush2.bf16.msra.mxu0 %v608
    %684 = vmatprep.subr.bf16.mxu0 0
    %685 = vmatpush2.bf16.msra.mxu0 %v607
    %686 = vmatprep.subr.bf16.mxu0 0
    %687 = vmatpush2.bf16.msra.mxu0 %v606
    %688 = vmatprep.subr.bf16.mxu0 0
    %689 = vmatpush2.bf16.msra.mxu0 %v605
    %690 = vmatprep.subr.bf16.mxu0 0
    %691 = vmatpush2.bf16.msra.mxu0 %v604
    %692 = vmatprep.mubr.bf16.mxu0 %v394
    %693 = vmatmul.mubr.bf16.gmra.mxu0 %v393
    %v694 = vpop.f32.mrf.mxu0
    %v695 = vadd.f32 %v466, %v694
    %v696 = vpop.f32.mrf.mxu0
    %v697 = vpop.f32.mrf.mxu0
    %v698 = vpop.f32.mrf.mxu0
    %699 = vdwg.mxu0
    %700 = vmatprep.subr.bf16.mxu0 0
    %701 = vmatpush1.bf16.msra.mxu0 %v619
    %702 = vmatprep.subr.bf16.mxu0 0
    %703 = vmatpush1.bf16.msra.mxu0 %v618
    %704 = vmatprep.subr.bf16.mxu0 0
    %705 = vmatpush1.bf16.msra.mxu0 %v617
    %706 = vmatprep.subr.bf16.mxu0 0
    %707 = vmatpush1.bf16.msra.mxu0 %v616
    %708 = vmatprep.subr.bf16.mxu0 0
    %709 = vmatpush1.bf16.msra.mxu0 %v615
    %710 = vmatprep.subr.bf16.mxu0 0
    %711 = vmatpush1.bf16.msra.mxu0 %v614
    %712 = vmatprep.subr.bf16.mxu0 0
    %713 = vmatpush1.bf16.msra.mxu0 %v613
    %714 = vmatprep.subr.bf16.mxu0 0
    %715 = vmatpush1.bf16.msra.mxu0 %v612
    %716 = vmatprep.subr.bf16.mxu0 0
    %717 = vmatpush2.bf16.msra.mxu0 %v627
    %718 = vmatprep.subr.bf16.mxu0 0
    %719 = vmatpush2.bf16.msra.mxu0 %v626
    %720 = vmatprep.subr.bf16.mxu0 0
    %721 = vmatpush2.bf16.msra.mxu0 %v625
    %722 = vmatprep.subr.bf16.mxu0 0
    %723 = vmatpush2.bf16.msra.mxu0 %v624
    %724 = vmatprep.subr.bf16.mxu0 0
    %725 = vmatpush2.bf16.msra.mxu0 %v623
    %726 = vmatprep.subr.bf16.mxu0 0
    %727 = vmatpush2.bf16.msra.mxu0 %v622
    %728 = vmatprep.subr.bf16.mxu0 0
    %729 = vmatpush2.bf16.msra.mxu0 %v621
    %730 = vmatprep.subr.bf16.mxu0 0
    %731 = vmatpush2.bf16.msra.mxu0 %v620
    %732 = vmatprep.mubr.bf16.mxu0 %v396
    %733 = vmatmul.mubr.bf16.gmra.mxu0 %v395
    %v734 = vpop.f32.mrf.mxu0
    %v735 = vadd.f32 %v695, %v734
    %v736 = vpop.f32.mrf.mxu0
    %v737 = vpop.f32.mrf.mxu0
    %v738 = vpop.f32.mrf.mxu0
    %739 = vdwg.mxu0
    %v740 = vmax.f32 %v735, 0.0
    %v741 = vpack.c.bf16 %v740, %v740
    %v742 = vld [vmem:[#allocation9] sm:$0xf]
    %v743 = vld [vmem:[#allocation9 + $0x4] sm:$0xf]
    %v744 = vld [vmem:[#allocation9 + $0x8] sm:$0xf]
    %v745 = vld [vmem:[#allocation9 + $0xc] sm:$0xf]
    %v746 = vld [vmem:[#allocation9 + $0x10] sm:$0xf]
    %v747 = vld [vmem:[#allocation9 + $0x14] sm:$0xf]
    %v748 = vld [vmem:[#allocation9 + $0x18] sm:$0xf]
    %v749 = vld [vmem:[#allocation9 + $0x1c] sm:$0xf]
    %v750 = vld [vmem:[#allocation9 + $0x20] sm:$0xf]
    %v751 = vld [vmem:[#allocation9 + $0x24] sm:$0xf]
    %v752 = vld [vmem:[#allocation9 + $0x28] sm:$0xf]
    %v753 = vld [vmem:[#allocation9 + $0x2c] sm:$0xf]
    %v754 = vld [vmem:[#allocation9 + $0x30] sm:$0xf]
    %v755 = vld [vmem:[#allocation9 + $0x34] sm:$0xf]
    %v756 = vld [vmem:[#allocation9 + $0x38] sm:$0xf]
    %v757 = vld [vmem:[#allocation9 + $0x3c] sm:$0xf]
    %v758 = vld [vmem:[%s6] sm:$0x1]
    %v760 = vlaneseq
    %v761 = vshrl.u32 %v760, 7
    %v762 = vsub.s32 0, %v761
    %v763 = vrot.slane %v758, %v762
    %v781 = vunpack.c.l.b16 %v742
    %v782 = vunpack.c.l.b16 %v743
    %v783 = vunpack.c.l.b16 %v744
    %v784 = vunpack.c.l.b16 %v745
    %v785 = vunpack.c.l.b16 %v746
    %v786 = vunpack.c.l.b16 %v747
    %v787 = vunpack.c.l.b16 %v748
    %v788 = vunpack.c.l.b16 %v749
    %v789 = vunpack.c.l.b16 %v750
    %v790 = vunpack.c.l.b16 %v751
    %v791 = vunpack.c.l.b16 %v752
    %v792 = vunpack.c.l.b16 %v753
    %v793 = vunpack.c.l.b16 %v754
    %v794 = vunpack.c.l.b16 %v755
    %v795 = vunpack.c.l.b16 %v756
    %v796 = vunpack.c.l.b16 %v757
    %v797 = vpack.c.b16 %v782, %v781
    %v798 = vpack.c.b16 %v784, %v783
    %v799 = vpack.c.b16 %v786, %v785
    %v800 = vpack.c.b16 %v788, %v787
    %v801 = vpack.c.b16 %v790, %v789
    %v802 = vpack.c.b16 %v792, %v791
    %v803 = vpack.c.b16 %v794, %v793
    %v804 = vpack.c.b16 %v796, %v795
    %813 = vmatprep.subr.bf16.mxu0 0
    %814 = vmatpush1.bf16.msra.mxu0 %v804
    %815 = vmatprep.subr.bf16.mxu0 0
    %816 = vmatpush1.bf16.msra.mxu0 %v803
    %817 = vmatprep.subr.bf16.mxu0 0
    %818 = vmatpush1.bf16.msra.mxu0 %v802
    %819 = vmatprep.subr.bf16.mxu0 0
    %820 = vmatpush1.bf16.msra.mxu0 %v801
    %821 = vmatprep.subr.bf16.mxu0 0
    %822 = vmatpush1.bf16.msra.mxu0 %v800
    %823 = vmatprep.subr.bf16.mxu0 0
    %824 = vmatpush1.bf16.msra.mxu0 %v799
    %825 = vmatprep.subr.bf16.mxu0 0
    %826 = vmatpush1.bf16.msra.mxu0 %v798
    %827 = vmatprep.subr.bf16.mxu0 0
    %828 = vmatpush1.bf16.msra.mxu0 %v797
    %829 = vmatprep.subr.bf16.mxu0 0
    %830 = vmatpush2.bf16.msra.mxu0 0
    %831 = vmatprep.subr.bf16.mxu0 0
    %832 = vmatpush2.bf16.msra.mxu0 0
    %833 = vmatprep.subr.bf16.mxu0 0
    %834 = vmatpush2.bf16.msra.mxu0 0
    %835 = vmatprep.subr.bf16.mxu0 0
    %836 = vmatpush2.bf16.msra.mxu0 0
    %837 = vmatprep.subr.bf16.mxu0 0
    %838 = vmatpush2.bf16.msra.mxu0 0
    %839 = vmatprep.subr.bf16.mxu0 0
    %840 = vmatpush2.bf16.msra.mxu0 0
    %841 = vmatprep.subr.bf16.mxu0 0
    %842 = vmatpush2.bf16.msra.mxu0 0
    %843 = vmatprep.subr.bf16.mxu0 0
    %844 = vmatpush2.bf16.msra.mxu0 0
    %845 = vmatprep.mubr.bf16.mxu0 0
    %846 = vmatmul.mubr.bf16.gmra.mxu0 %v741
    %v847 = vpop.f32.mrf.mxu0
    %v848 = vadd.f32 %v763, %v847
    %v849 = vpop.f32.mrf.mxu0
    %v850 = vpop.f32.mrf.mxu0
    %v851 = vpop.f32.mrf.mxu0
    %852 = vdwg.mxu0
    %853 = vst [vmem:[%s7] sm:$0xff] %v848
    // Predicated region
    $region50: #{_lambda_.1} parent=1 // pred_check
      _
    $region51: #{_lambda_.1} parent=1 // pred_check_branch
      %855 = sbr.rel (0) target = $region53
    $region52: #{_lambda_.1} parent=1 // pred_region
      _
    $region53: #{_lambda_.1} parent=1 // pred_fallthru
      _
    // Predicated region
    $region54: #{_lambda_.1} parent=1 // pred_check
      _
    $region55: #{_lambda_.1} parent=1 // pred_check_branch
      %857 = sbr.rel (0) target = $region57
    $region56: #{_lambda_.1} parent=1 // pred_region
      _
    $region57: #{_lambda_.1} parent=1 // pred_fallthru
      _
    %858 = vsyncpa [#allocation3], 1
    %859 = vsyncpa [#allocation5], 1
    %860 = vsyncpa [#allocation8], 1

</llo_original>
